<compile_context>
chip_gen: v7x
topology: tpu7x:2x2x1
jax: 0.10.0
libtpu: 0.0.40
codegen_flags: <defaults>
</compile_context>

<pallas_src>
import functools

import jax
import jax.numpy as jnp
from jax.experimental import pallas as pl
from jax.experimental.pallas import tpu as pltpu


def _round_up(x, m):
    return ((x + m - 1) // m) * m


def _linear_kernel(x_ref, w_ref, b_ref, o_ref):
    # In-kernel operand cast (no-op on the f32 path, bf16 cast lands in spare VPU slots).
    x = x_ref[...].astype(w_ref.dtype)
    acc = jnp.dot(x, w_ref[...], preferred_element_type=jnp.float32)
    # Bias is replicated to 8 sublanes at prep time; one row broadcasts over the tile.
    o_ref[...] = (acc + b_ref[0:1, :]).astype(o_ref.dtype)


def prepare_linear_params(weight, bias, compute_dtype=jnp.float32):
    """One-time parameter prep (analogue of caching W.T on the model).

    weight: (N, K) as in nn.Linear; bias: (N,).
    Returns:
      w_t_padded: (K, N_pad) compute_dtype — K kept at true size, N lane-dense (128-mult)
      bias8:      (8, N_pad) f32           — sublane-replicated bias
    """
    N, K = weight.shape
    N_pad = _round_up(N, 128)
    w_t = jnp.zeros((K, N_pad), compute_dtype)
    w_t = w_t.at[:, :N].set(weight.T.astype(compute_dtype))
    b = jnp.zeros((8, N_pad), jnp.float32)
    b = b.at[:, :N].set(jnp.broadcast_to(bias.astype(jnp.float32)[None, :], (8, N)))
    return w_t, b


def _choose_tiles(B, N_pad):
    # Batch: single full-M tile for small batches (block dim == full array dim is legal,
    # no M padding op); 256-row tiles otherwise (full MXU push on v6e/v7x, 2x128 on v5e).
    if B <= 256:
        TM, B_pad = B, B
    else:
        TM = 256
        B_pad = _round_up(B, TM)
    # Output: largest 128-multiple tile <= 512 that divides N_pad (avoid the 512->128 cliff).
    TN = N_pad
    if N_pad > 512:
        for cand in (512, 384, 256, 128):
            if N_pad % cand == 0:
                TN = cand
                break
    return TM, B_pad, TN


@functools.partial(jax.jit, static_argnames=("out_dim", "out_dtype"))
def linear_regression_forward(input_batch, w_t, bias8, out_dim, out_dtype=jnp.float32):
    """input_batch: (B, S, F); w_t: (S*F, N_pad); bias8: (8, N_pad)."""
    B, S, F = input_batch.shape
    K = S * F
    Kw, N_pad = w_t.shape
    assert Kw == K, "weights were prepared for a different seq_len * input_dim"
    assert out_dim <= N_pad, "out_dim larger than the prepared output width"

    TM, B_pad, TN = _choose_tiles(B, N_pad)

    # Flatten exactly like torch .view(batch, -1); no dtype cast and no K padding here.
    x = input_batch.reshape(B, K)
    if B_pad != B:
        x = jnp.pad(x, ((0, B_pad - B), (0, 0)))

    grid = (N_pad // TN, B_pad // TM)  # batch innermost -> weight-stationary

    x_it = jnp.dtype(x.dtype).itemsize
    w_it = jnp.dtype(w_t.dtype).itemsize
    o_it = jnp.dtype(out_dtype).itemsize
    cost = pl.CostEstimate(
        flops=2 * B_pad * K * N_pad,
        transcendentals=0,
        bytes_accessed=(B_pad * K * x_it + K * N_pad * w_it
                        + 8 * N_pad * 4 + B_pad * N_pad * o_it),
    )

    # Double-buffered per-tile footprint; keep the scoped-VMEM request inside v7x's
    # 64 MiB physical budget (v5e/v6e have 128 MiB physical, 16/32 MiB default scoped).
    tile_bytes = 2 * (TM * K * x_it + K * TN * w_it + 8 * TN * 4 + TM * TN * o_it)
    vmem_limit = int(min(max(2 * tile_bytes, 32 << 20), 48 << 20))
    # TODO(synk): if K * TN ever outgrows this budget (earliest on v7x), add a K grid axis
    # ("arbitrary") with an f32 VMEM accumulator and pl.when init/finalize.

    out_padded = pl.pallas_call(
        _linear_kernel,
        out_shape=jax.ShapeDtypeStruct((B_pad, N_pad), out_dtype),
        grid_spec=pltpu.PrefetchScalarGridSpec(
            num_scalar_prefetch=0,
            grid=grid,
            in_specs=[
                pl.BlockSpec((TM, K), lambda j, i: (i, 0)),
                pl.BlockSpec((K, TN), lambda j, i: (0, j)),   # constant over inner axis
                pl.BlockSpec((8, TN), lambda j, i: (0, j)),
            ],
            out_specs=pl.BlockSpec((TM, TN), lambda j, i: (i, j)),
        ),
        compiler_params=pltpu.CompilerParams(
            dimension_semantics=("parallel", "parallel"),
            vmem_limit_bytes=vmem_limit),
        cost_estimate=cost,
    )(x, w_t, bias8)

    return out_padded[:B, :out_dim]


if __name__ == "__main__":
    # Small shapes consistent with the module: batch=2, seq_len=5, input_dim=8, output_dim=4.
    batch, seq_len, input_dim, output_dim = 2, 5, 8, 4

    key = jax.random.PRNGKey(0)
    kx, kw, kb = jax.random.split(key, 3)

    x = jax.random.normal(kx, (batch, seq_len, input_dim), dtype=jnp.float32)
    fan_in = input_dim * seq_len
    bound = 1.0 / jnp.sqrt(fan_in)
    weight = jax.random.uniform(kw, (output_dim, fan_in), jnp.float32, -bound, bound)
    bias = jax.random.uniform(kb, (output_dim,), jnp.float32, -bound, bound)

    ref = x.reshape(batch, -1) @ weight.T + bias

    # f32 operand path (matches the PyTorch reference).
    w_t32, b32 = prepare_linear_params(weight, bias, jnp.float32)
    out = linear_regression_forward(x, w_t32, b32, output_dim)
    jax.block_until_ready(out)
    assert out.shape == (batch, output_dim)
    assert jnp.allclose(out, ref, atol=1e-4, rtol=1e-4)

    # bf16 operand / f32 accumulate path (v6e / v7x MXU-friendly); looser tolerance.
    w_t16, b16 = prepare_linear_params(weight, bias, jnp.bfloat16)
    out_bf16 = linear_regression_forward(x, w_t16, b16, output_dim)
    jax.block_until_ready(out_bf16)
    assert out_bf16.shape == (batch, output_dim)
    assert jnp.allclose(out_bf16, ref, atol=5e-2, rtol=5e-2)

    print("KERNEL_OK")
</pallas_src>

<mosaic_0001>
module attributes {stable_mosaic.version = 11 : i64} {
  func.func @_linear_kernel(%arg0: i32, %arg1: i32, %arg2: memref<2x40xf32, #tpu.memory_space<vmem>>, %arg3: memref<40x128xf32, #tpu.memory_space<vmem>>, %arg4: memref<8x128xf32, #tpu.memory_space<vmem>>, %arg5: memref<2x128xf32, #tpu.memory_space<vmem>>) attributes {dimension_semantics = [#tpu.dimension_semantics<parallel>, #tpu.dimension_semantics<parallel>], iteration_bounds = array<i64: 1, 1>, scalar_prefetch = 0 : i64, scratch_operands = 0 : i64, tpu.core_type = #tpu.core_type<tc>, window_params = [{transform_indices = @transform_0, window_bounds = array<i64: 2, 40>}, {transform_indices = @transform_1, window_bounds = array<i64: 40, 128>}, {transform_indices = @transform_2, window_bounds = array<i64: 8, 128>}, {transform_indices = @transform_3, window_bounds = array<i64: 2, 128>}]} {
    %c0 = arith.constant 0 : index
    %c0_0 = arith.constant 0 : index
    %0 = vector.load %arg2[%c0, %c0_0] : memref<2x40xf32, #tpu.memory_space<vmem>>, vector<2x40xf32>
    %c0_1 = arith.constant 0 : index
    %c0_2 = arith.constant 0 : index
    %1 = vector.load %arg3[%c0_1, %c0_2] : memref<40x128xf32, #tpu.memory_space<vmem>>, vector<40x128xf32>
    %cst = arith.constant dense<0.000000e+00> : vector<2x128xf32>
    %2 = tpu.matmul %0, %1, %cst {dimension_numbers = #tpu.dot_dimension_numbers<[1], [0], [0], [1], [0, 0, 1, 1], [], []>} : vector<2x40xf32>, vector<40x128xf32>, vector<2x128xf32> -> vector<2x128xf32>
    %c0_3 = arith.constant 0 : index
    %c0_4 = arith.constant 0 : index
    %3 = vector.load %arg4[%c0_3, %c0_4] : memref<8x128xf32, #tpu.memory_space<vmem>>, vector<1x128xf32>
    %4 = vector.broadcast %3 : vector<1x128xf32> to vector<2x128xf32>
    %5 = arith.addf %2, %4 : vector<2x128xf32>
    %c0_5 = arith.constant 0 : index
    %c0_6 = arith.constant 0 : index
    %6 = vector.load %arg5[%c0_5, %c0_6] : memref<2x128xf32, #tpu.memory_space<vmem>>, vector<2x128xf32>
    tpu.vector_store %arg5[%c0_5, %c0_6], %5 {strides = array<i32>} : memref<2x128xf32, #tpu.memory_space<vmem>>, vector<2x128xf32>,
    return
  }
  func.func @transform_0(%arg0: i32, %arg1: i32) -> (i32, i32) {
    %c0_i32 = arith.constant 0 : i32
    %c0_i32_0 = arith.constant 0 : i32
    return %arg1, %c0_i32 : i32, i32
  }
  func.func @transform_1(%arg0: i32, %arg1: i32) -> (i32, i32) {
    %c0_i32 = arith.constant 0 : i32
    %c0_i32_0 = arith.constant 0 : i32
    return %c0_i32, %arg0 : i32, i32
  }
  func.func @transform_2(%arg0: i32, %arg1: i32) -> (i32, i32) {
    %c0_i32 = arith.constant 0 : i32
    %c0_i32_0 = arith.constant 0 : i32
    return %c0_i32, %arg0 : i32, i32
  }
  func.func @transform_3(%arg0: i32, %arg1: i32) -> (i32, i32) {
    %c0_i32 = arith.constant 0 : i32
    return %arg1, %arg0 : i32, i32
  }
}

</mosaic_0001>

<llo_original>
// kernel: linear_regression_forward.1
$region0: #{linear_regression_forward.1}
  #allocation0 [shape = 'u32[]', space=smem, size = 0x4, offset = 0x4, fixed_abs, tag = 'smem constant byte address 0x4 - core index']
  #allocation1 [shape = 'u32[144,128]{1,0:T(1,128)}', space=vmem, size = 0x12000, scoped, tag = 'internal scratch']
  %s0 = inlined_call_operand.vmem [shape: f32[2,40], index: 0, kind: input, shape index: {}]
  %s1 = inlined_call_operand.vmem [shape: f32[40,128], index: 1, kind: input, shape index: {}]
  %s2 = inlined_call_operand.vmem [shape: f32[8,128], index: 2, kind: input, shape index: {}]
  %s3 = inlined_call_operand.hbm [shape: f32[2,128], index: 3, kind: output, shape index: {}]
  %s4 = sld [smem:[#allocation0]]
  $region22: #{linear_regression_forward.1} parent=0
    _
  %s6 = ssub.s32 1, %s4
  %s7 = scalar_select 0, %s6, %s4
  $region1: #{linear_regression_forward.1} parent=0
    #allocation2 [shape = 'u8[1024]{0}', space=vmem, size = 0x400, scoped, tag = 'output window, operand 0, single buffered']
    #allocation3 [shape = 's32[1]{0}', space=sflag, size = 0x4, scoped, tag = 'scoped memory for linear_regression_forward.1']
    %8 = vsyncpa [#allocation3], 0
    // Predicated region
    $region2: #{linear_regression_forward.1} parent=1 // pred_check
      _
    $region3: #{linear_regression_forward.1} parent=1 // pred_check_branch
      %10 = sbr.rel (0) target = $region5
    $region4: #{linear_regression_forward.1} parent=1 // pred_region
      _
    $region5: #{linear_regression_forward.1} parent=1 // pred_fallthru
      _
    // Predicated region
    $region6: #{linear_regression_forward.1} parent=1 // pred_check
      _
    $region7: #{linear_regression_forward.1} parent=1 // pred_check_branch
      %12 = sbr.rel (0) target = $region9
    $region8: #{linear_regression_forward.1} parent=1 // pred_region
      _
    $region9: #{linear_regression_forward.1} parent=1 // pred_fallthru
      _
    // Predicated region
    $region10: #{linear_regression_forward.1} parent=1 // pred_check
      _
    $region11: #{linear_regression_forward.1} parent=1 // pred_check_branch
      %14 = sbr.rel (0) target = $region13
    $region12: #{linear_regression_forward.1} parent=1 // pred_region
      _
    $region13: #{linear_regression_forward.1} parent=1 // pred_fallthru
      _
    %v15 = vld [vmem:[%s0] sm:$0x3]
    %v16 = vld [vmem:[%s1] sm:$0xff]
    %v17 = vld [vmem:[%s1 + $0x8] sm:$0xff]
    %v18 = vld [vmem:[%s1 + $0x10] sm:$0xff]
    %v19 = vld [vmem:[%s1 + $0x18] sm:$0xff]
    %v20 = vld [vmem:[%s1 + $0x20] sm:$0xff]
    %v21 = vld [vmem:[%s2] sm:$0x1]
    %v22 = vlaneseq
    %v23 = vshrl.u32 %v22, 7
    %v24 = vsub.s32 0, %v23
    %v25 = vrot.slane %v21, %v24
    %vm26 = vcmask 326656
    %v28 = vsel %vm26, %v15, 0
    %30 = vmatprep.subr.mxu0 0.0
    %31 = vmatpush1.msra.mxu0 %v16
    %32 = vmatprep.subr.mxu0 0.0
    %33 = vmatpush1.msra.mxu0 %v17
    %34 = vmatprep.subr.mxu0 0.0
    %35 = vmatpush1.msra.mxu0 %v18
    %36 = vmatprep.subr.mxu0 0.0
    %37 = vmatpush1.msra.mxu0 %v19
    %38 = vmatprep.subr.mxu0 0.0
    %39 = vmatpush1.msra.mxu0 %v20
    %40 = vmatprep.subr.mxu0 0.0
    %41 = vmatpush1.msra.mxu0 0.0
    %42 = vmatprep.subr.mxu0 0.0
    %43 = vmatpush1.msra.mxu0 0.0
    %44 = vmatprep.subr.mxu0 0.0
    %45 = vmatpush1.msra.mxu0 0.0
    %46 = vmatprep.subr.mxu0 0.0
    %47 = vmatpush1.msra.mxu0 0.0
    %48 = vmatprep.subr.mxu0 0.0
    %49 = vmatpush1.msra.mxu0 0.0
    %50 = vmatprep.subr.mxu0 0.0
    %51 = vmatpush1.msra.mxu0 0.0
    %52 = vmatprep.subr.mxu0 0.0
    %53 = vmatpush1.msra.mxu0 0.0
    %54 = vmatprep.subr.mxu0 0.0
    %55 = vmatpush1.msra.mxu0 0.0
    %56 = vmatprep.subr.mxu0 0.0
    %57 = vmatpush1.msra.mxu0 0.0
    %58 = vmatprep.subr.mxu0 0.0
    %59 = vmatpush1.msra.mxu0 0.0
    %60 = vmatprep.subr.mxu0 0.0
    %61 = vmatpush1.msra.mxu0 0.0
    %62 = vmatprep.subr.mxu0 0.0
    %63 = vmatpush1.msra.mxu0 0.0
    %64 = vmatprep.subr.mxu0 0.0
    %65 = vmatpush1.msra.mxu0 0.0
    %66 = vmatprep.subr.mxu0 0.0
    %67 = vmatpush1.msra.mxu0 0.0
    %68 = vmatprep.subr.mxu0 0.0
    %69 = vmatpush1.msra.mxu0 0.0
    %70 = vmatprep.subr.mxu0 0.0
    %71 = vmatpush1.msra.mxu0 0.0
    %72 = vmatprep.subr.mxu0 0.0
    %73 = vmatpush1.msra.mxu0 0.0
    %74 = vmatprep.subr.mxu0 0.0
    %75 = vmatpush1.msra.mxu0 0.0
    %76 = vmatprep.subr.mxu0 0.0
    %77 = vmatpush1.msra.mxu0 0.0
    %78 = vmatprep.subr.mxu0 0.0
    %79 = vmatpush1.msra.mxu0 0.0
    %80 = vmatprep.subr.mxu0 0.0
    %81 = vmatpush1.msra.mxu0 0.0
    %82 = vmatprep.subr.mxu0 0.0
    %83 = vmatpush1.msra.mxu0 0.0
    %84 = vmatprep.subr.mxu0 0.0
    %85 = vmatpush1.msra.mxu0 0.0
    %86 = vmatprep.subr.mxu0 0.0
    %87 = vmatpush1.msra.mxu0 0.0
    %88 = vmatprep.subr.mxu0 0.0
    %89 = vmatpush1.msra.mxu0 0.0
    %90 = vmatprep.subr.mxu0 0.0
    %91 = vmatpush1.msra.mxu0 0.0
    %92 = vmatprep.subr.mxu0 0.0
    %93 = vmatpush1.msra.mxu0 0.0
    %94 = vmatprep.mubr.f32.mxu0 0.0
    %95 = vmatmul.mubr.f32.gmra.mrb[0].mxu0 %v28
    %v96 = vpop.f32.mrb[0].mxu0
    %v97 = vadd.f32 %v25, %v96
    %v98 = vpop.f32.mrb[0].mxu0
    %99 = vdwg.mxu0
    %100 = vst [vmem:[#allocation2] sm:$0x3] %v97
    // Predicated region
    $region14: #{linear_regression_forward.1} parent=1 // pred_check
      _
    $region15: #{linear_regression_forward.1} parent=1 // pred_check_branch
      %102 = sbr.rel (0) target = $region17
    $region16: #{linear_regression_forward.1} parent=1 // pred_region
      %s104 = ssub.s32 32, 32
      %105 = vsyncadd [#allocation3], %s104
      %s107 = sshll.u32 [#allocation2], 4
      %s108 = int_to_ptr.vmem [resolvable:$true] %s107
      %110 = dma.vmem_to_hbm [thread:$0]  %s108, 32, %s3, [#allocation3]
    $region17: #{linear_regression_forward.1} parent=1 // pred_fallthru
      _
    // Predicated region
    $region18: #{linear_regression_forward.1} parent=1 // pred_check
      _
    $region19: #{linear_regression_forward.1} parent=1 // pred_check_branch
      %112 = sbr.rel (0) target = $region21
    $region20: #{linear_regression_forward.1} parent=1 // pred_region
      %113 = dma.done [#allocation3], 32
    $region21: #{linear_regression_forward.1} parent=1 // pred_fallthru
      _
    %114 = vsyncpa [#allocation3], 1

</llo_original>
